<compile_context>
chip_gen: v6e
topology: v6e:2x2x1
jax: 0.10.0
libtpu: 0.0.40
codegen_flags: <defaults>
</compile_context>

<pallas_src>
import functools

import jax
import jax.numpy as jnp
from jax.experimental import pallas as pl
from jax.experimental.pallas import tpu as pltpu

SCALE = 2.5
LEAK = 0.001
STEEPNESS = 0.2
BETA = 20.0
INV_BETA = 1.0 / BETA
SOFTPLUS_THRESHOLD = 20.0  # PyTorch default softplus threshold

_LANE = 128


def _leaky_tanh_kernel(x_ref, o_ref, *, compute_dtype):
    # Transcendentals (tanh / exp / log1p) run in `compute_dtype`:
    #   f32 on v5e (no bf16 EUP), bf16 on v6e/v7x for bf16 inputs (doubles EUP
    #   throughput and halves vreg pressure).
    x = x_ref[...].astype(compute_dtype)

    t = jnp.tanh(STEEPNESS * x)

    # PyTorch softplus(x, beta, threshold):
    #   beta*x > threshold -> x, else log1p(exp(beta*x)) / beta
    bx = BETA * x
    sp = jnp.log1p(jnp.exp(jnp.minimum(bx, SOFTPLUS_THRESHOLD))) * INV_BETA
    sp = jnp.where(bx > SOFTPLUS_THRESHOLD, x, sp)

    # Final affine combination in f32 (cheap VPU work, keeps accuracy for the
    # bf16-transcendental path), then cast to the I/O dtype.
    out = (SCALE * t.astype(jnp.float32)
           + SCALE
           + LEAK * sp.astype(jnp.float32))
    o_ref[...] = out.astype(o_ref.dtype)


def _reference_math(x):
    """Plain-jnp forward (f32) — used for the <128-element ragged tail and tests."""
    xf = x.astype(jnp.float32)
    bx = BETA * xf
    sp = jnp.where(
        bx > SOFTPLUS_THRESHOLD,
        xf,
        jnp.log1p(jnp.exp(jnp.minimum(bx, SOFTPLUS_THRESHOLD))) * INV_BETA,
    )
    return SCALE * jnp.tanh(STEEPNESS * xf) + SCALE + LEAK * sp


def _device_kind():
    try:
        return jax.devices()[0].device_kind.lower()
    except Exception:
        return ""


def _run_pallas(x2d, out_dtype, br, compute_dtype, dim_sem):
    rows = x2d.shape[0]
    grid = (pl.cdiv(rows, br),)
    kernel = functools.partial(_leaky_tanh_kernel, compute_dtype=compute_dtype)
    return pl.pallas_call(
        kernel,
        out_shape=jax.ShapeDtypeStruct((rows, _LANE), out_dtype),
        grid_spec=pltpu.PrefetchScalarGridSpec(
            num_scalar_prefetch=0,
            grid=grid,
            in_specs=[pl.BlockSpec((br, _LANE), lambda i: (i, 0))],
            out_specs=pl.BlockSpec((br, _LANE), lambda i: (i, 0)),
        ),
        compiler_params=pltpu.CompilerParams(
            dimension_semantics=dim_sem,
            vmem_limit_bytes=32 * 1024 * 1024,
        ),
    )(x2d)


def leaky_tanh(x, *, block_rows=None):
    orig_shape = x.shape
    orig_dtype = x.dtype

    kind = _device_kind()
    is_v7 = "v7" in kind
    bf16_native = ("v6" in kind) or is_v7  # v5e and older: no bf16 VPU/EUP

    compute_dtype = jnp.float32
    if orig_dtype == jnp.bfloat16 and bf16_native:
        compute_dtype = jnp.bfloat16

    flat = x.reshape(-1)
    n = flat.shape[0]
    n_main = (n // _LANE) * _LANE

    # Inputs smaller than one lane row: plain jnp (no point launching a kernel).
    if n_main == 0:
        return _reference_math(flat).astype(orig_dtype).reshape(orig_shape)

    rows = n_main // _LANE

    # dtype-aware sublane multiple: 8 (f32), 16 (bf16/f16), 32 (int8/fp8).
    sub = max(8, 32 // jnp.dtype(orig_dtype).itemsize)

    if block_rows is None:
        if is_v7:
            # 4096 rows (8 MiB double-buffered in+out for f32) fits v7x's
            # smaller VMEM; shrink further so both TensorCores get >= 2 blocks.
            br = 4096
            while br > 512 and rows // br < 4:
                br //= 2
        else:
            # v5e / v6e: 8192 rows -> 4 MiB f32 block, ~16 MiB double-buffered.
            br = 8192
    else:
        br = block_rows

    br = min(br, rows)
    if br < rows:
        br = max(sub, (br // sub) * sub)

    num_blocks = pl.cdiv(rows, br)
    if is_v7 and num_blocks >= 2:
        # Actually shard the grid axis across v7x's two TensorCores.
        dim_sem = (pltpu.CORE_PARALLEL,)
    else:
        dim_sem = ("parallel",)

    if n_main == n:
        x2d = flat.reshape(rows, _LANE)          # free reshape, no padding pass
    else:
        x2d = flat[:n_main].reshape(rows, _LANE)

    out2d = _run_pallas(x2d, orig_dtype, br, compute_dtype, dim_sem)
    out_flat = out2d.reshape(-1)

    if n_main != n:
        # <=127-element tail: tiny plain-jnp expression, no full-tensor pad/slice.
        tail = _reference_math(flat[n_main:]).astype(orig_dtype)
        out_flat = jnp.concatenate([out_flat, tail])

    return out_flat.reshape(orig_shape)


if __name__ == "__main__":
    key = jax.random.PRNGKey(0)
    k0, k1, k2 = jax.random.split(key, 3)

    # NCHW-style input consistent with typical use of the activation.
    x = jax.random.normal(k0, (2, 4, 16, 16), dtype=jnp.float32) * 3.0
    out = jax.block_until_ready(leaky_tanh(x))
    ref = _reference_math(x)
    assert out.shape == x.shape
    assert jnp.allclose(out, ref, atol=1e-5, rtol=1e-5), "f32 mismatch vs reference"

    # Ragged size (385 = 3*128 + 1) exercising the sub-128 tail path.
    xr = jax.random.normal(k1, (5, 77), dtype=jnp.float32) * 3.0
    outr = jax.block_until_ready(leaky_tanh(xr))
    refr = _reference_math(xr)
    assert outr.shape == xr.shape
    assert jnp.allclose(outr, refr, atol=1e-5, rtol=1e-5), "ragged mismatch vs reference"

    # bf16 I/O path (bf16 transcendentals on v6e/v7x, f32 upcast on v5e).
    xb = (jax.random.normal(k2, (4, 8, 32), dtype=jnp.float32) * 3.0).astype(jnp.bfloat16)
    outb = jax.block_until_ready(leaky_tanh(xb))
    refb = _reference_math(xb)
    assert outb.shape == xb.shape
    assert jnp.allclose(outb.astype(jnp.float32), refb, atol=8e-2, rtol=3e-2), \
        "bf16 mismatch vs reference"

    print("KERNEL_OK")
</pallas_src>

<mosaic_0001>
module attributes {stable_mosaic.version = 11 : i64} {
  func.func @_leaky_tanh_kernel(%arg0: i32, %arg1: memref<16x128xf32, #tpu.memory_space<vmem>>, %arg2: memref<16x128xf32, #tpu.memory_space<vmem>>) attributes {dimension_semantics = [#tpu.dimension_semantics<parallel>], iteration_bounds = array<i64: 1>, scalar_prefetch = 0 : i64, scratch_operands = 0 : i64, tpu.core_type = #tpu.core_type<tc>, window_params = [{transform_indices = @transform_0, window_bounds = array<i64: 16, 128>}, {transform_indices = @transform_1, window_bounds = array<i64: 16, 128>}]} {
    %c0 = arith.constant 0 : index
    %c0_0 = arith.constant 0 : index
    %0 = vector.load %arg1[%c0, %c0_0] : memref<16x128xf32, #tpu.memory_space<vmem>>, vector<16x128xf32>
    %cst = arith.constant 2.000000e-01 : f32
    %1 = vector.broadcast %cst : f32 to vector<16x128xf32>
    %2 = arith.mulf %1, %0 : vector<16x128xf32>
    %3 = math.tanh %2 : vector<16x128xf32>
    %cst_1 = arith.constant 2.000000e+01 : f32
    %4 = vector.broadcast %cst_1 : f32 to vector<16x128xf32>
    %5 = arith.mulf %4, %0 : vector<16x128xf32>
    %cst_2 = arith.constant 2.000000e+01 : f32
    %6 = vector.broadcast %cst_2 : f32 to vector<16x128xf32>
    %7 = arith.minimumf %5, %6 : vector<16x128xf32>
    %8 = math.exp %7 : vector<16x128xf32>
    %9 = math.log1p %8 : vector<16x128xf32>
    %cst_3 = arith.constant 5.000000e-02 : f32
    %10 = vector.broadcast %cst_3 : f32 to vector<16x128xf32>
    %11 = arith.mulf %9, %10 : vector<16x128xf32>
    %cst_4 = arith.constant 2.000000e+01 : f32
    %12 = vector.broadcast %cst_4 : f32 to vector<16x128xf32>
    %13 = arith.cmpf ogt, %5, %12 : vector<16x128xf32>
    %14 = arith.select %13, %0, %11 : vector<16x128xi1>, vector<16x128xf32>
    %cst_5 = arith.constant 2.500000e+00 : f32
    %15 = vector.broadcast %cst_5 : f32 to vector<16x128xf32>
    %16 = arith.mulf %15, %3 : vector<16x128xf32>
    %cst_6 = arith.constant 2.500000e+00 : f32
    %17 = vector.broadcast %cst_6 : f32 to vector<16x128xf32>
    %18 = arith.addf %16, %17 : vector<16x128xf32>
    %cst_7 = arith.constant 1.000000e-03 : f32
    %19 = vector.broadcast %cst_7 : f32 to vector<16x128xf32>
    %20 = arith.mulf %19, %14 : vector<16x128xf32>
    %21 = arith.addf %18, %20 : vector<16x128xf32>
    %c0_8 = arith.constant 0 : index
    %c0_9 = arith.constant 0 : index
    %22 = vector.load %arg2[%c0_8, %c0_9] : memref<16x128xf32, #tpu.memory_space<vmem>>, vector<16x128xf32>
    tpu.vector_store %arg2[%c0_8, %c0_9], %21 {strides = array<i32>} : memref<16x128xf32, #tpu.memory_space<vmem>>, vector<16x128xf32>,
    return
  }
  func.func @transform_0(%arg0: i32) -> (i32, i32) {
    %c0_i32 = arith.constant 0 : i32
    %c0_i32_0 = arith.constant 0 : i32
    return %arg0, %c0_i32 : i32, i32
  }
  func.func @transform_1(%arg0: i32) -> (i32, i32) {
    %c0_i32 = arith.constant 0 : i32
    %c0_i32_0 = arith.constant 0 : i32
    return %arg0, %c0_i32 : i32, i32
  }
}

</mosaic_0001>

<llo_original>
// kernel: tpu_custom_call.1
$region0: #{tpu_custom_call.1}
  #allocation0 [shape = 'u32[]', space=smem, size = 0x4, offset = 0x4, fixed_abs, tag = 'smem constant byte address 0x4 - core index']
  #allocation1 [shape = 'u32[144,128]{1,0:T(1,128)}', space=vmem, size = 0x12000, scoped, tag = 'internal scratch']
  %s0 = inlined_call_operand.hbm [shape: f32[16,128], index: 0, kind: input, shape index: {}]
  %s1 = inlined_call_operand.hbm [shape: f32[16,128], index: 1, kind: output, shape index: {}]
  %s2 = sld [smem:[#allocation0]]
  $region18: #{tpu_custom_call.1} parent=0
    _
  %s4 = ssub.s32 1, %s2
  %s5 = scalar_select 0, %s4, %s2
  $region1: #{tpu_custom_call.1} parent=0
    #allocation2 [shape = 'u8[8192]{0}', space=vmem, size = 0x2000, scoped, tag = 'input window, operand 0, single buffered']
    #allocation3 [shape = 's32[1]{0}', space=sflag, size = 0x4, scoped, tag = 'scoped memory for tpu_custom_call.1']
    #allocation4 [shape = 's32[1]{0}', space=sflag, size = 0x4, scoped, tag = 'scoped memory for tpu_custom_call.1']
    #allocation5 [shape = 'u8[8192]{0}', space=vmem, size = 0x2000, scoped, tag = 'output window, operand 0, single buffered']
    %6 = vsyncpa [#allocation3], 0
    %7 = vsyncpa [#allocation4], 0
    // Predicated region
    $region2: #{tpu_custom_call.1} parent=1 // pred_check
      _
    $region3: #{tpu_custom_call.1} parent=1 // pred_check_branch
      %9 = sbr.rel (0) target = $region5
    $region4: #{tpu_custom_call.1} parent=1 // pred_region
      %s11 = ssub.s32 256, 256
      %12 = vsyncadd [#allocation3], %s11
      %s13 = sshll.u32 [#allocation2], 4
      %s14 = int_to_ptr.vmem [resolvable:$true] %s13
      %19 = dma.hbm_to_vmem [thread:$0]  %s0, 256, %s14, [#allocation3], 128, 128, 8
    $region5: #{tpu_custom_call.1} parent=1 // pred_fallthru
      _
    // Predicated region
    $region6: #{tpu_custom_call.1} parent=1 // pred_check
      _
    $region7: #{tpu_custom_call.1} parent=1 // pred_check_branch
      %21 = sbr.rel (0) target = $region9
    $region8: #{tpu_custom_call.1} parent=1 // pred_region
      %22 = dma.done [#allocation3], 256
    $region9: #{tpu_custom_call.1} parent=1 // pred_fallthru
      _
    %v23 = vld [vmem:[#allocation2] sm:$0xff]
    %v24 = vld [vmem:[#allocation2 + $0x8] sm:$0xff]
    %v25 = vmul.f32 %v23, 0.2
    %v26 = vmul.f32 %v24, 0.2
    %v27 = vtanh.pop %v25
    %v28 = vtanh.pop %v26
    %v29 = vmul.f32 %v23, 20.0
    %v30 = vmul.f32 %v24, 20.0
    %v31 = vmin.f32 %v29, 20.0
    %v32 = vmin.f32 %v30, 20.0
    %v33 = vmul.f32 %v31, 1.442695
    %v34 = vpow.pop %v33
    %v35 = vmul.f32 %v32, 1.442695
    %v36 = vpow.pop %v35
    %v37 = vadd.f32 %v34, 1.0
    %v38 = vlog2.pop %v37
    %v39 = vmul.f32 %v38, 0.6931472
    %v40 = vmul.f32 -0.5, %v34
    %v41 = vadd.f32 %v40, 1.0
    %v42 = vmul.f32 %v41, %v34
    %v43 = vand.u32 2147483647, %v34
    %vm44 = vcmp.lt.f32.partialorder %v43, 0.0004427343
    %v45 = vsel %vm44, %v42, %v39
    %v46 = vadd.f32 %v36, 1.0
    %v47 = vlog2.pop %v46
    %v48 = vmul.f32 %v47, 0.6931472
    %v49 = vmul.f32 -0.5, %v36
    %v50 = vadd.f32 %v49, 1.0
    %v51 = vmul.f32 %v50, %v36
    %v52 = vand.u32 2147483647, %v36
    %vm53 = vcmp.lt.f32.partialorder %v52, 0.0004427343
    %v54 = vsel %vm53, %v51, %v48
    %v55 = vmul.f32 %v45, 0.05
    %v56 = vmul.f32 %v54, 0.05
    %vm57 = vcmp.gt.f32.partialorder %v29, 20.0
    %vm58 = vcmp.gt.f32.partialorder %v30, 20.0
    %v59 = vsel %vm57, %v23, %v55
    %v60 = vsel %vm58, %v24, %v56
    %v61 = vmul.f32 %v27, 2.5
    %v62 = vmul.f32 %v28, 2.5
    %v63 = vadd.f32 %v61, 2.5
    %v64 = vadd.f32 %v62, 2.5
    %v65 = vmul.f32 %v59, 0.001
    %v66 = vmul.f32 %v60, 0.001
    %v67 = vadd.f32 %v63, %v65
    %v68 = vadd.f32 %v64, %v66
    %69 = vst [vmem:[#allocation5] sm:$0xff] %v67
    %70 = vst [vmem:[#allocation5 + $0x8] sm:$0xff] %v68
    // Predicated region
    $region10: #{tpu_custom_call.1} parent=1 // pred_check
      _
    $region11: #{tpu_custom_call.1} parent=1 // pred_check_branch
      %72 = sbr.rel (0) target = $region13
    $region12: #{tpu_custom_call.1} parent=1 // pred_region
      %s74 = ssub.s32 256, 256
      %75 = vsyncadd [#allocation4], %s74
      %s76 = sshll.u32 [#allocation5], 4
      %s77 = int_to_ptr.vmem [resolvable:$true] %s76
      %82 = dma.vmem_to_hbm [thread:$0]  %s77, 256, %s1, [#allocation4], 128, 128, 8
    $region13: #{tpu_custom_call.1} parent=1 // pred_fallthru
      _
    // Predicated region
    $region14: #{tpu_custom_call.1} parent=1 // pred_check
      _
    $region15: #{tpu_custom_call.1} parent=1 // pred_check_branch
      %84 = sbr.rel (0) target = $region17
    $region16: #{tpu_custom_call.1} parent=1 // pred_region
      %85 = dma.done [#allocation4], 256
    $region17: #{tpu_custom_call.1} parent=1 // pred_fallthru
      _
    %86 = vsyncpa [#allocation3], 1
    %87 = vsyncpa [#allocation4], 1

</llo_original>
